<compile_context>
chip_gen: v7x
topology: tpu7x:2x2x1
jax: 0.10.0
libtpu: 0.0.40
codegen_flags: <defaults>
</compile_context>

<pallas_src>
import math

import numpy as np
import jax
import jax.numpy as jnp
from jax.experimental import pallas as pl
from jax.experimental.pallas import tpu as pltpu

D_MODEL = 16
NUM_HEADS = 4
HEAD_DIM = 4
REP = NUM_HEADS * NUM_HEADS * HEAD_DIM  # 64 (h, t, d) index space


# ----------------------------------------------------------------------------
# Constant 0/1 matrices that express the head mixing as matmuls.
# Index m = 16*h + 4*t + d  with h, t, d in [0, 4).
# ----------------------------------------------------------------------------
def _head_mix_constants():
    H, HD, D, M = NUM_HEADS, HEAD_DIM, D_MODEL, REP
    EQ = np.zeros((D, M), np.float32)   # q[4h+d]    -> m (any t)
    EK = np.zeros((D, M), np.float32)   # k/v[4t+d]  -> m (any h)
    EA = np.zeros((D, M), np.float32)   # attn[4h+t] -> m (any d)
    RS = np.zeros((M, D), np.float32)   # sum over d : m -> scores[4h+t]
    RV = np.zeros((M, D), np.float32)   # sum over t : m -> values[4h+d]
    GB = np.zeros((D, D), np.float32)   # per-head group-sum broadcast
    for h in range(H):
        for t in range(H):
            GB[H * h + t, H * h:H * h + H] = 1.0
            for d in range(HD):
                m = (H * HD) * h + HD * t + d
                EQ[HD * h + d, m] = 1.0
                EK[HD * t + d, m] = 1.0
                EA[H * h + t, m] = 1.0
                RS[m, H * h + t] = 1.0
                RV[m, HD * h + d] = 1.0
    return (jnp.asarray(EQ), jnp.asarray(EK), jnp.asarray(EA),
            jnp.asarray(RS), jnp.asarray(RV), jnp.asarray(GB))


def _build_packed_params(wqkv, bqkv, wo, bo):
    """Permute / fuse the module parameters into 3 packed, transposed slabs."""
    EQ, EK, EA, RS, RV, GB = _head_mix_constants()
    scale = 1.0 / math.sqrt(HEAD_DIM)

    # PyTorch qkv layout: column 12*h + {0..3 -> q, 4..7 -> k, 8..11 -> v}.
    perm_q = np.array([12 * h + d for h in range(NUM_HEADS) for d in range(HEAD_DIM)])
    perm_k = perm_q + 4
    perm_v = perm_q + 8

    wq = wqkv[:, perm_q] * scale          # fold 1/sqrt(d_k) into q
    bq = bqkv[perm_q] * scale
    wk, bk = wqkv[:, perm_k], bqkv[perm_k]
    wv, bv = wqkv[:, perm_v], bqkv[perm_v]

    # Fused projection straight into the replicated (h, t, d) index space.
    wbig = jnp.concatenate([wq @ EQ, wk @ EK, wv @ EK], axis=1)   # (16, 192)
    bbig = jnp.concatenate([bq @ EQ, bk @ EK, bv @ EK], axis=0)   # (192,)
    worv = RV @ wo                                                # (64, 16) fused reduce+output proj

    # Pack by column width (transposed so tokens-on-lanes matmuls are W^T @ x^T).
    w16 = jnp.concatenate([wbig.T, EA.T, GB.T], axis=0)           # (272, 16)
    w64 = jnp.concatenate([RS.T, worv.T], axis=0)                 # (32, 64)
    bcol = jnp.concatenate([bbig, bo], axis=0).reshape(-1, 1)     # (208, 1)
    return w16, w64, bcol


# ----------------------------------------------------------------------------
# Kernel: processes one lane tile of Nt tokens; everything is [rows, Nt].
# ----------------------------------------------------------------------------
def mhsa_kernel(x_ref, w16_ref, w64_ref, b_ref, o_ref):
    x = x_ref[...]                                      # (16, Nt) tokens on lanes

    wbig_t = w16_ref[0:3 * REP, :]                      # (192, 16)
    ea_t = w16_ref[3 * REP:4 * REP, :]                  # (64, 16)
    gb_t = w16_ref[4 * REP:4 * REP + D_MODEL, :]        # (16, 16)
    rs_t = w64_ref[0:D_MODEL, :]                        # (16, 64)
    worv_t = w64_ref[D_MODEL:2 * D_MODEL, :]            # (16, 64)
    bbig = b_ref[0:3 * REP, :]                          # (192, 1)
    bo = b_ref[3 * REP:3 * REP + D_MODEL, :]            # (16, 1)

    # Fused QKV projection, already replicated over the (h, t, d) index space.
    qkv = jnp.dot(wbig_t, x, preferred_element_type=jnp.float32) + bbig  # (192, Nt)
    q = qkv[0:REP, :]                                   # q[4h+d] at m=(h,t,d), scaled
    k = qkv[REP:2 * REP, :]                             # k[4t+d] at m=(h,t,d)
    v = qkv[2 * REP:3 * REP, :]                         # v[4t+d] at m=(h,t,d)

    # scores[4h+t] = sum_d q[4h+d] * k[4t+d] / sqrt(d_k)   (scale folded into q)
    s = jnp.dot(rs_t, q * k, preferred_element_type=jnp.float32)         # (16, Nt)

    # Softmax over t within each head group (row max is constant per token,
    # hence per group -> identical softmax, numerically stable).
    e = jnp.exp(s - jnp.max(s, axis=0, keepdims=True))
    den = jnp.dot(gb_t, e, preferred_element_type=jnp.float32)           # group sums
    attn = e / den                                                       # (16, Nt)

    # values[4h+d] = sum_t attn[4h+t] * v[4t+d]; output projection fused in worv.
    arep = jnp.dot(ea_t, attn, preferred_element_type=jnp.float32)       # (64, Nt)
    o_ref[...] = jnp.dot(worv_t, arep * v,
                         preferred_element_type=jnp.float32) + bo        # (16, Nt)


# ----------------------------------------------------------------------------
# Wrapper
# ----------------------------------------------------------------------------
def multihead_self_attention(x, wqkv, bqkv, wo, bo):
    B, S, D = x.shape
    assert D == D_MODEL
    w16, w64, bcol = _build_packed_params(wqkv, bqkv, wo, bo)

    N = B * S
    n128 = -(-N // 128)
    # 128-512 tokens per grid step; keep >=2 blocks when possible (v7x megacore).
    gpb = min(4, max(1, n128 // 2))
    nt = 128 * gpb
    nblocks = -(-N // nt)
    npad = nblocks * nt

    # Layout plumbing: tokens on lanes -> lane-dense loads/stores in the kernel.
    xt = x.reshape(N, D).T                               # (16, N)
    if npad > N:
        xt = jnp.pad(xt, ((0, 0), (0, npad - N)))

    out_t = pl.pallas_call(
        mhsa_kernel,
        out_shape=jax.ShapeDtypeStruct((D_MODEL, npad), jnp.float32),
        grid=(nblocks,),
        in_specs=[
            pl.BlockSpec((D_MODEL, nt), lambda i: (0, i)),
            pl.BlockSpec(w16.shape, lambda i: (0, 0)),
            pl.BlockSpec(w64.shape, lambda i: (0, 0)),
            pl.BlockSpec(bcol.shape, lambda i: (0, 0)),
        ],
        out_specs=pl.BlockSpec((D_MODEL, nt), lambda i: (0, i)),
        compiler_params=pltpu.CompilerParams(dimension_semantics=("parallel",)),
    )(xt, w16, w64, bcol)

    return out_t[:, :N].T.reshape(B, S, D_MODEL)


# ----------------------------------------------------------------------------
# Pure-JAX mirror of the PyTorch forward (for correctness checking).
# ----------------------------------------------------------------------------
def reference(x, wqkv, bqkv, wo, bo):
    B, S, _ = x.shape
    qkv = x @ wqkv + bqkv                                # (B, S, 48)
    qkv = qkv.reshape(B, S, NUM_HEADS, 3 * HEAD_DIM)
    q, k, v = qkv[..., :4], qkv[..., 4:8], qkv[..., 8:12]
    scaled = jnp.einsum('bshd,bstd->bsht', q, k) / math.sqrt(HEAD_DIM)
    attn = jax.nn.softmax(scaled, axis=-1)
    vals = jnp.einsum('bsht,bstd->bshd', attn, v).reshape(B, S, D_MODEL)
    return vals @ wo + bo


if __name__ == "__main__":
    key = jax.random.PRNGKey(0)
    kx, k1, k2, k3, k4 = jax.random.split(key, 5)

    B, S = 8, 19
    x = jax.random.normal(kx, (B, S, D_MODEL), jnp.float32)
    wqkv = jax.random.normal(k1, (D_MODEL, 3 * D_MODEL), jnp.float32) * 0.25
    bqkv = jax.random.normal(k2, (3 * D_MODEL,), jnp.float32) * 0.1
    wo = jax.random.normal(k3, (D_MODEL, D_MODEL), jnp.float32) * 0.25
    bo = jax.random.normal(k4, (D_MODEL,), jnp.float32) * 0.1

    out = multihead_self_attention(x, wqkv, bqkv, wo, bo)
    out = jax.block_until_ready(out)

    ref = reference(x, wqkv, bqkv, wo, bo)
    assert out.shape == (B, S, D_MODEL)
    assert jnp.allclose(out, ref, rtol=2e-4, atol=2e-4), (out, ref)
    print("KERNEL_OK")
</pallas_src>

<mosaic_0001>
module attributes {stable_mosaic.version = 11 : i64} {
  func.func @mhsa_kernel(%arg0: i32, %arg1: memref<16x128xf32, #tpu.memory_space<vmem>>, %arg2: memref<272x16xf32, #tpu.memory_space<vmem>>, %arg3: memref<32x64xf32, #tpu.memory_space<vmem>>, %arg4: memref<208x1xf32, #tpu.memory_space<vmem>>, %arg5: memref<16x128xf32, #tpu.memory_space<vmem>>) attributes {dimension_semantics = [#tpu.dimension_semantics<parallel>], iteration_bounds = array<i64: 2>, scalar_prefetch = 0 : i64, scratch_operands = 0 : i64, tpu.core_type = #tpu.core_type<tc>, window_params = [{transform_indices = @transform_0, window_bounds = array<i64: 16, 128>}, {pipeline_mode = #tpu.pipeline_mode<synchronous>, transform_indices = @transform_1, window_bounds = array<i64: 272, 16>}, {pipeline_mode = #tpu.pipeline_mode<synchronous>, transform_indices = @transform_2, window_bounds = array<i64: 32, 64>}, {pipeline_mode = #tpu.pipeline_mode<synchronous>, transform_indices = @transform_3, window_bounds = array<i64: 208, 1>}, {transform_indices = @transform_4, window_bounds = array<i64: 16, 128>}]} {
    %c0 = arith.constant 0 : index
    %c0_0 = arith.constant 0 : index
    %0 = vector.load %arg1[%c0, %c0_0] : memref<16x128xf32, #tpu.memory_space<vmem>>, vector<16x128xf32>
    %c0_1 = arith.constant 0 : index
    %c0_2 = arith.constant 0 : index
    %1 = vector.load %arg2[%c0_1, %c0_2] : memref<272x16xf32, #tpu.memory_space<vmem>>, vector<192x16xf32>
    %c192 = arith.constant 192 : index
    %c0_3 = arith.constant 0 : index
    %2 = vector.load %arg2[%c192, %c0_3] : memref<272x16xf32, #tpu.memory_space<vmem>>, vector<64x16xf32>
    %c256 = arith.constant 256 : index
    %c0_4 = arith.constant 0 : index
    %3 = vector.load %arg2[%c256, %c0_4] : memref<272x16xf32, #tpu.memory_space<vmem>>, vector<16x16xf32>
    %c0_5 = arith.constant 0 : index
    %c0_6 = arith.constant 0 : index
    %4 = vector.load %arg3[%c0_5, %c0_6] : memref<32x64xf32, #tpu.memory_space<vmem>>, vector<16x64xf32>
    %c16 = arith.constant 16 : index
    %c0_7 = arith.constant 0 : index
    %5 = vector.load %arg3[%c16, %c0_7] : memref<32x64xf32, #tpu.memory_space<vmem>>, vector<16x64xf32>
    %c0_8 = arith.constant 0 : index
    %c0_9 = arith.constant 0 : index
    %6 = vector.load %arg4[%c0_8, %c0_9] : memref<208x1xf32, #tpu.memory_space<vmem>>, vector<192x1xf32>
    %c192_10 = arith.constant 192 : index
    %c0_11 = arith.constant 0 : index
    %7 = vector.load %arg4[%c192_10, %c0_11] : memref<208x1xf32, #tpu.memory_space<vmem>>, vector<16x1xf32>
    %cst = arith.constant dense<0.000000e+00> : vector<192x128xf32>
    %8 = tpu.matmul %1, %0, %cst {dimension_numbers = #tpu.dot_dimension_numbers<[1], [0], [0], [1], [0, 0, 1, 1], [], []>} : vector<192x16xf32>, vector<16x128xf32>, vector<192x128xf32> -> vector<192x128xf32>
    %9 = vector.broadcast %6 : vector<192x1xf32> to vector<192x128xf32>
    %10 = arith.addf %8, %9 : vector<192x128xf32>
    %11 = vector.extract_strided_slice %10 {offsets = [0, 0], sizes = [64, 128], strides = [1, 1]} : vector<192x128xf32> to vector<64x128xf32>
    %12 = vector.extract_strided_slice %10 {offsets = [64, 0], sizes = [64, 128], strides = [1, 1]} : vector<192x128xf32> to vector<64x128xf32>
    %13 = vector.extract_strided_slice %10 {offsets = [128, 0], sizes = [64, 128], strides = [1, 1]} : vector<192x128xf32> to vector<64x128xf32>
    %14 = arith.mulf %11, %12 : vector<64x128xf32>
    %cst_12 = arith.constant dense<0.000000e+00> : vector<16x128xf32>
    %15 = tpu.matmul %4, %14, %cst_12 {dimension_numbers = #tpu.dot_dimension_numbers<[1], [0], [0], [1], [0, 0, 1, 1], [], []>} : vector<16x64xf32>, vector<64x128xf32>, vector<16x128xf32> -> vector<16x128xf32>
    %cst_13 = arith.constant dense<0xFF800000> : vector<128xf32>
    %16 = vector.multi_reduction <maximumf>, %15, %cst_13 [0] : vector<16x128xf32> to vector<128xf32>
    %17 = vector.shape_cast %16 : vector<128xf32> to vector<1x128xf32>
    %18 = vector.broadcast %17 : vector<1x128xf32> to vector<16x128xf32>
    %19 = arith.subf %15, %18 : vector<16x128xf32>
    %20 = math.exp %19 : vector<16x128xf32>
    %cst_14 = arith.constant dense<0.000000e+00> : vector<16x128xf32>
    %21 = tpu.matmul %3, %20, %cst_14 {dimension_numbers = #tpu.dot_dimension_numbers<[1], [0], [0], [1], [0, 0, 1, 1], [], []>} : vector<16x16xf32>, vector<16x128xf32>, vector<16x128xf32> -> vector<16x128xf32>
    %22 = arith.divf %20, %21 : vector<16x128xf32>
    %cst_15 = arith.constant dense<0.000000e+00> : vector<64x128xf32>
    %23 = tpu.matmul %2, %22, %cst_15 {dimension_numbers = #tpu.dot_dimension_numbers<[1], [0], [0], [1], [0, 0, 1, 1], [], []>} : vector<64x16xf32>, vector<16x128xf32>, vector<64x128xf32> -> vector<64x128xf32>
    %24 = arith.mulf %23, %13 : vector<64x128xf32>
    %cst_16 = arith.constant dense<0.000000e+00> : vector<16x128xf32>
    %25 = tpu.matmul %5, %24, %cst_16 {dimension_numbers = #tpu.dot_dimension_numbers<[1], [0], [0], [1], [0, 0, 1, 1], [], []>} : vector<16x64xf32>, vector<64x128xf32>, vector<16x128xf32> -> vector<16x128xf32>
    %26 = vector.broadcast %7 : vector<16x1xf32> to vector<16x128xf32>
    %27 = arith.addf %25, %26 : vector<16x128xf32>
    %c0_17 = arith.constant 0 : index
    %c0_18 = arith.constant 0 : index
    %28 = vector.load %arg5[%c0_17, %c0_18] : memref<16x128xf32, #tpu.memory_space<vmem>>, vector<16x128xf32>
    tpu.vector_store %arg5[%c0_17, %c0_18], %27 {strides = array<i32>} : memref<16x128xf32, #tpu.memory_space<vmem>>, vector<16x128xf32>,
    return
  }
  func.func @transform_0(%arg0: i32) -> (i32, i32) {
    %c0_i32 = arith.constant 0 : i32
    %c0_i32_0 = arith.constant 0 : i32
    return %c0_i32, %arg0 : i32, i32
  }
  func.func @transform_1(%arg0: i32) -> (i32, i32) {
    %c0_i32 = arith.constant 0 : i32
    %c0_i32_0 = arith.constant 0 : i32
    %c0_i32_1 = arith.constant 0 : i32
    return %c0_i32, %c0_i32_0 : i32, i32
  }
  func.func @transform_2(%arg0: i32) -> (i32, i32) {
    %c0_i32 = arith.constant 0 : i32
    %c0_i32_0 = arith.constant 0 : i32
    %c0_i32_1 = arith.constant 0 : i32
    return %c0_i32, %c0_i32_0 : i32, i32
  }
  func.func @transform_3(%arg0: i32) -> (i32, i32) {
    %c0_i32 = arith.constant 0 : i32
    %c0_i32_0 = arith.constant 0 : i32
    %c0_i32_1 = arith.constant 0 : i32
    return %c0_i32, %c0_i32_0 : i32, i32
  }
  func.func @transform_4(%arg0: i32) -> (i32, i32) {
    %c0_i32 = arith.constant 0 : i32
    %c0_i32_0 = arith.constant 0 : i32
    return %c0_i32, %arg0 : i32, i32
  }
}

</mosaic_0001>

<llo_original>
// kernel: tpu_custom_call.1
$region0: #{tpu_custom_call.1}
  #allocation0 [shape = 'u32[]', space=smem, size = 0x4, offset = 0x4, fixed_abs, tag = 'smem constant byte address 0x4 - core index']
  #allocation1 [shape = 'u32[144,128]{1,0:T(1,128)}', space=vmem, size = 0x12000, scoped, tag = 'internal scratch']
  %s0 = inlined_call_operand.vmem [shape: f32[16,256], index: 0, kind: input, shape index: {}]
  %s1 = inlined_call_operand.vmem [shape: f32[272,16], index: 1, kind: input, shape index: {}]
  %s2 = inlined_call_operand.vmem [shape: f32[32,64], index: 2, kind: input, shape index: {}]
  %s3 = inlined_call_operand.vmem [shape: f32[208,1], index: 3, kind: input, shape index: {}]
  %s4 = inlined_call_operand.hbm [shape: f32[16,256], index: 4, kind: output, shape index: {}]
  %s5 = sld [smem:[#allocation0]]
  $region87: #{tpu_custom_call.1} parent=0
    _
  %s7 = ssub.s32 1, %s5
  %s8 = scalar_select 0, %s7, %s5
  $region1: #{tpu_custom_call.1} parent=0
    #allocation2 [shape = 'u8[16384]{0}', space=vmem, size = 0x4000, scoped, tag = 'input window, operand 0']
    #allocation3 [shape = 'u8[16384]{0}', space=vmem, size = 0x4000, scoped, tag = 'output window, operand 0']
    #allocation4 [shape = 's32[2]{0}', space=sflag, size = 0x8, scoped, tag = 'scoped memory for tpu_custom_call.1']
    %9 = vsyncpa [#allocation4], 0
    %s10 = scalar_lea.sflag [#allocation4], 1
    %11 = vsyncpa %s10, 0
    loop: start=0, step=1, limit=4
    $region2: #{tpu_custom_call.1} parent=1 // loop_pre_header
      _
    $region3: #{tpu_custom_call.1} parent=1 // loop_header
      %s13 = sphi 0, %s17
      %p14 = scmp.ge.s32.totalorder %s13, 4
      %s23 = sphi 0, %s25
      %s26 = sphi 0, %s23
      %s27 = sphi 0, %s26
      %s43 = sphi 0, %s27
      %s47 = sphi 0, %s47
      %s49 = sphi 0, %s47
      %s50 = sphi 0, %s49
      %s64 = sphi 0, %s50
      %s68 = sphi 0, %s68
      %s70 = sphi 0, %s68
      %s71 = sphi 0, %s70
      %s85 = sphi 0, %s71
      %s89 = sphi 0, %s89
      %s91 = sphi 0, %s89
      %s92 = sphi 0, %s91
      %s106 = sphi 0, %s92
      %s112 = sphi 0, %s114
      %s115 = sphi 0, %s112
      %s116 = sphi 0, %s115
      %s132 = sphi 0, %s116
    $region4: #{tpu_custom_call.1} parent=1 // loop_header_branch
      %16 = sbr.rel (%p14) target = $region8
    $region5: #{tpu_custom_call.1} parent=1 // loop_body
      %s18 = ssub.s32 %s13, 1
      %s19 = ssub.s32 %s13, 2
      %s20 = sadd.s32 %s13, 1
      %s21 = ssub.s32 %s13, %s20
      %p22 = scmp.eq.s32.totalorder %s21, 0
      %s24 = sadd.s32 %s23, 1
      %s25 = scalar_select %p22, %s23, %s24
      %p28 = pneg %p22
      %p29 = scmp.eq.s32.totalorder %s13, 1
      %p30 = por %p28, %p29
      %p31 = scmp.ne.s32.totalorder %s23, %s26
      %p32 = scmp.eq.s32.totalorder %s13, 0
      %p33 = por %p31, %p32
      %p34 = scmp.ne.s32.totalorder %s23, %s26
      %p35 = scmp.eq.s32.totalorder %s18, 1
      %p36 = por %p34, %p35
      %p37 = scmp.ne.s32.totalorder %s26, %s27
      %p38 = scmp.eq.s32.totalorder %s18, 0
      %p39 = por %p37, %p38
      %p40 = scmp.ne.s32.totalorder %s26, %s27
      %p41 = scmp.eq.s32.totalorder %s19, 1
      %p42 = por %p40, %p41
      %p44 = scmp.ne.s32.totalorder %s27, %s43
      %p45 = scmp.eq.s32.totalorder %s19, 0
      %p46 = por %p44, %p45
      %s48 = sadd.s32 %s47, 1
      %p51 = scmp.eq.s32.totalorder %s13, 1
      %p52 = scmp.ne.s32.totalorder %s47, %s49
      %p53 = scmp.eq.s32.totalorder %s13, 0
      %p54 = por %p52, %p53
      %p55 = scmp.ne.s32.totalorder %s47, %s49
      %p56 = scmp.eq.s32.totalorder %s18, 1
      %p57 = por %p55, %p56
      %p58 = scmp.ne.s32.totalorder %s49, %s50
      %p59 = scmp.eq.s32.totalorder %s18, 0
      %p60 = por %p58, %p59
      %p61 = scmp.ne.s32.totalorder %s49, %s50
      %p62 = scmp.eq.s32.totalorder %s19, 1
      %p63 = por %p61, %p62
      %p65 = scmp.ne.s32.totalorder %s50, %s64
      %p66 = scmp.eq.s32.totalorder %s19, 0
      %p67 = por %p65, %p66
      %s69 = sadd.s32 %s68, 1
      %p72 = scmp.eq.s32.totalorder %s13, 1
      %p73 = scmp.ne.s32.totalorder %s68, %s70
      %p74 = scmp.eq.s32.totalorder %s13, 0
      %p75 = por %p73, %p74
      %p76 = scmp.ne.s32.totalorder %s68, %s70
      %p77 = scmp.eq.s32.totalorder %s18, 1
      %p78 = por %p76, %p77
      %p79 = scmp.ne.s32.totalorder %s70, %s71
      %p80 = scmp.eq.s32.totalorder %s18, 0
      %p81 = por %p79, %p80
      %p82 = scmp.ne.s32.totalorder %s70, %s71
      %p83 = scmp.eq.s32.totalorder %s19, 1
      %p84 = por %p82, %p83
      %p86 = scmp.ne.s32.totalorder %s71, %s85
      %p87 = scmp.eq.s32.totalorder %s19, 0
      %p88 = por %p86, %p87
      %s90 = sadd.s32 %s89, 1
      %p93 = scmp.eq.s32.totalorder %s13, 1
      %p94 = scmp.ne.s32.totalorder %s89, %s91
      %p95 = scmp.eq.s32.totalorder %s13, 0
      %p96 = por %p94, %p95
      %p97 = scmp.ne.s32.totalorder %s89, %s91
      %p98 = scmp.eq.s32.totalorder %s18, 1
      %p99 = por %p97, %p98
      %p100 = scmp.ne.s32.totalorder %s91, %s92
      %p101 = scmp.eq.s32.totalorder %s18, 0
      %p102 = por %p100, %p101
      %p103 = scmp.ne.s32.totalorder %s91, %s92
      %p104 = scmp.eq.s32.totalorder %s19, 1
      %p105 = por %p103, %p104
      %p107 = scmp.ne.s32.totalorder %s92, %s106
      %p108 = scmp.eq.s32.totalorder %s19, 0
      %p109 = por %p107, %p108
      %s110 = ssub.s32 %s13, %s20
      %p111 = scmp.eq.s32.totalorder %s110, 0
      %s113 = sadd.s32 %s112, 1
      %s114 = scalar_select %p111, %s112, %s113
      %p117 = pneg %p111
      %p118 = scmp.eq.s32.totalorder %s13, 1
      %p119 = por %p117, %p118
      %p120 = scmp.ne.s32.totalorder %s112, %s115
      %p121 = scmp.eq.s32.totalorder %s13, 0
      %p122 = por %p120, %p121
      %p123 = scmp.ne.s32.totalorder %s112, %s115
      %p124 = scmp.eq.s32.totalorder %s18, 1
      %p125 = por %p123, %p124
      %p126 = scmp.ne.s32.totalorder %s115, %s116
      %p127 = scmp.eq.s32.totalorder %s18, 0
      %p128 = por %p126, %p127
      %p129 = scmp.ne.s32.totalorder %s115, %s116
      %p130 = scmp.eq.s32.totalorder %s19, 1
      %p131 = por %p129, %p130
      %p133 = scmp.ne.s32.totalorder %s116, %s132
      %p134 = scmp.eq.s32.totalorder %s19, 0
      %p135 = por %p133, %p134
      %p136 = scmp.le.s32.totalorder 1, %s13
      %p137 = scmp.lt.s32.totalorder %s13, 3
      %p138 = pnand %p136, %p137
      %p139 = pneg %p138
      // Predicated region
      $region9: #{tpu_custom_call.1} parent=5 // pred_check
        _
      $region10: #{tpu_custom_call.1} parent=5 // pred_check_branch
        %141 = sbr.rel (%p138) target = $region12
      $region11: #{tpu_custom_call.1} parent=5 // pred_region
        %s142 = ssub.s32 %s13, 1
        // Predicated region
        $region13: #{tpu_custom_call.1} parent=11 // pred_check
          %p143 = pneg %p60
        $region14: #{tpu_custom_call.1} parent=11 // pred_check_branch
          %145 = sbr.rel (%p143) target = $region16
        $region15: #{tpu_custom_call.1} parent=11 // pred_region
          _
        $region16: #{tpu_custom_call.1} parent=11 // pred_fallthru
          _
        // Predicated region
        $region17: #{tpu_custom_call.1} parent=11 // pred_check
          %p146 = pneg %p81
        $region18: #{tpu_custom_call.1} parent=11 // pred_check_branch
          %148 = sbr.rel (%p146) target = $region20
        $region19: #{tpu_custom_call.1} parent=11 // pred_region
          _
        $region20: #{tpu_custom_call.1} parent=11 // pred_fallthru
          _
        // Predicated region
        $region21: #{tpu_custom_call.1} parent=11 // pred_check
          %p149 = pneg %p102
        $region22: #{tpu_custom_call.1} parent=11 // pred_check_branch
          %151 = sbr.rel (%p149) target = $region24
        $region23: #{tpu_custom_call.1} parent=11 // pred_region
          _
        $region24: #{tpu_custom_call.1} parent=11 // pred_fallthru
          _
      $region12: #{tpu_custom_call.1} parent=5 // pred_fallthru
        _
      %p152 = scmp.lt.s32.totalorder %s13, 2
      // Predicated region
      $region25: #{tpu_custom_call.1} parent=5 // pred_check
        %p153 = pneg %p152
      $region26: #{tpu_custom_call.1} parent=5 // pred_check_branch
        %155 = sbr.rel (%p153) target = $region28
      $region27: #{tpu_custom_call.1} parent=5 // pred_region
        // Predicated region
        $region29: #{tpu_custom_call.1} parent=27 // pred_check
          %p156 = pneg %p33
        $region30: #{tpu_custom_call.1} parent=27 // pred_check_branch
          %158 = sbr.rel (%p156) target = $region32
        $region31: #{tpu_custom_call.1} parent=27 // pred_region
          %s159 = sand.u32 %s23, 1
          %s160 = sand.u32 %s23, 1
          %s161 = smul.addr %s160, 16
          %s162 = scalar_lea.vmem [#allocation2], %s161
          %s163 = smul.addr %s13, 8
          %s164 = scalar_lea.vmem %s0, %s163
          // Predicated region
          $region33: #{tpu_custom_call.1} parent=31 // pred_check
            _
          $region34: #{tpu_custom_call.1} parent=31 // pred_check_branch
            %166 = sbr.rel (0) target = $region36
          $region35: #{tpu_custom_call.1} parent=31 // pred_region
            // Predicated region
            $region37: #{tpu_custom_call.1} parent=35 // pred_check
              _
            $region38: #{tpu_custom_call.1} parent=35 // pred_check_branch
              %168 = sbr.rel (0) target = $region40
            $region39: #{tpu_custom_call.1} parent=35 // pred_region
              // Predicated region
              $region52: #{tpu_custom_call.1} parent=39 // pred_check
                _
              $region53: #{tpu_custom_call.1} parent=39 // pred_check_branch
                %185 = sbr.rel (0) target = $region55
              $region54: #{tpu_custom_call.1} parent=39 // pred_region
                loop: start=0, step=1, limit=1
                $region56: #{tpu_custom_call.1} parent=54 // loop_pre_header
                  _
                $region57: #{tpu_custom_call.1} parent=54 // loop_header
                  %s187 = sphi 0, %s191
                  %p188 = scmp.ge.s32.totalorder %s187, 1
                  %s192 = sphi %s164, %s164
                  %s193 = sphi %s162, %s162
                $region58: #{tpu_custom_call.1} parent=54 // loop_header_branch
                  %190 = sbr.rel (%p188) target = $region62
                $region59: #{tpu_custom_call.1} parent=54 // loop_body
                  %v194 = vld [vmem:[%s192] sm:$0xff]
                  %195 = vst [vmem:[%s193] sm:$0xff] %v194
                  %v196 = vld [vmem:[%s192 + $0x10] sm:$0xff]
                  %197 = vst [vmem:[%s193 + $0x8] sm:$0xff] %v196
                $region60: #{tpu_custom_call.1} parent=54 // loop_footer
                  %s191 = sadd.s32 1, %s187
                $region61: #{tpu_custom_call.1} parent=54 // loop_footer_branch
                  %186 = sbr.rel target = $region57
                $region62: #{tpu_custom_call.1} parent=54 // loop_exit
                  _
              $region55: #{tpu_custom_call.1} parent=39 // pred_fallthru
                _
              // Predicated region
              $region63: #{tpu_custom_call.1} parent=39 // pred_check
                _
              $region64: #{tpu_custom_call.1} parent=39 // pred_check_branch
                %199 = sbr.rel target = $region66
              $region65: #{tpu_custom_call.1} parent=39 // pred_region
                _
              $region66: #{tpu_custom_call.1} parent=39 // pred_fallthru
                _
            $region40: #{tpu_custom_call.1} parent=35 // pred_fallthru
              _
            // Predicated region
            $region41: #{tpu_custom_call.1} parent=35 // pred_check
              _
            $region42: #{tpu_custom_call.1} parent=35 // pred_check_branch
              %170 = sbr.rel target = $region44
            $region43: #{tpu_custom_call.1} parent=35 // pred_region
              loop: start=0, step=1, limit=1
              $region45: #{tpu_custom_call.1} parent=43 // loop_pre_header
                _
              $region46: #{tpu_custom_call.1} parent=43 // loop_header
                %s173 = sphi 0, %s177
                %p174 = scmp.ge.s32.totalorder %s173, 1
                %s178 = sphi %s164, %s164
                %s179 = sphi %s162, %s162
              $region47: #{tpu_custom_call.1} parent=43 // loop_header_branch
                %176 = sbr.rel (%p174) target = $region51
              $region48: #{tpu_custom_call.1} parent=43 // loop_body
                %v180 = vld [vmem:[%s178] sm:$0xff]
                %181 = vst [vmem:[%s179] sm:$0xff] %v180
                %v182 = vld [vmem:[%s178 + $0x10] sm:$0xff]
                %183 = vst [vmem:[%s179 + $0x8] sm:$0xff] %v182
              $region49: #{tpu_custom_call.1} parent=43 // loop_footer
                %s177 = sadd.s32 1, %s173
              $region50: #{tpu_custom_call.1} parent=43 // loop_footer_branch
                %172 = sbr.rel target = $region46
              $region51: #{tpu_custom_call.1} parent=43 // loop_exit
                _
            $region44: #{tpu_custom_call.1} parent=35 // pred_fallthru
              _
          $region36: #{tpu_custom_call.1} parent=31 // pred_fallthru
            _
          %200 = vnop
        $region32: #{tpu_custom_call.1} parent=27 // pred_fallthru
          _
      $region28: #{tpu_custom_call.1} parent=5 // pred_fallthru
        _
      %p201 = scmp.le.s32.totalorder 1, %s13
      %p202 = scmp.lt.s32.totalorder %s13, 3
      %p203 = pnand %p201, %p202
      %p204 = pneg %p203
      // Predicated region
      $region67: #{tpu_custom_call.1} parent=5 // pred_check
        _
      $region68: #{tpu_custom_call.1} parent=5 // pred_check_branch
        %206 = sbr.rel (%p203) target = $region70
      $region69: #{tpu_custom_call.1} parent=5 // pred_region
        %s207 = ssub.s32 %s13, 1
        %s208 = sand.u32 %s26, 1
        %s209 = sand.u32 %s26, 1
        %s210 = smul.addr %s209, 16
        %s211 = scalar_lea.vmem [#allocation2], %s210
        // Predicated region
        $region71: #{tpu_custom_call.1} parent=69 // pred_check
          %p212 = pneg %p39
        $region72: #{tpu_custom_call.1} parent=69 // pred_check_branch
          %214 = sbr.rel (%p212) target = $region74
        $region73: #{tpu_custom_call.1} parent=69 // pred_region
          _
        $region74: #{tpu_custom_call.1} parent=69 // pred_fallthru
          _
        %s215 = sand.u32 %s26, 1
        %s216 = sand.u32 %s26, 1
        %s217 = smul.addr %s216, 16
        %s218 = scalar_lea.vmem [#allocation2], %s217
        %p219 = pneg %p39
        %p220 = pneg %p36
        %p221 = pneg %p60
        %p222 = pneg %p57
        %p223 = pneg %p81
        %p224 = pneg %p78
        %p225 = pneg %p102
        %p226 = pneg %p99
        %p227 = pneg %p128
        %p228 = pneg %p125
        %s229 = sand.u32 %s115, 1
        %s230 = scalar_lea.sflag [#allocation4], %s229
        %s231 = sand.u32 %s115, 1
        %s232 = smul.addr %s231, 16
        %s233 = scalar_lea.vmem [#allocation3], %s232
        %v234 = vld [vmem:[%s211] sm:$0xff]
        %v235 = vld [vmem:[%s211 + $0x8] sm:$0xff]
        %v236 = vld [vmem:[%s1] sm:$0xff]
        %v237 = vld [vmem:[%s1 + $0x8] sm:$0xff]
        %v238 = vld [vmem:[%s1 + $0x10] sm:$0xff]
        %v239 = vld [vmem:[%s1 + $0x18] sm:$0xff]
        %v240 = vld [vmem:[%s1 + $0x20] sm:$0xff]
        %v241 = vld [vmem:[%s1 + $0x28] sm:$0xff]
        %v242 = vld [vmem:[%s1 + $0x30] sm:$0xff]
        %v243 = vld [vmem:[%s1 + $0x38] sm:$0xff]
        %v244 = vld [vmem:[%s1 + $0x40] sm:$0xff]
        %v245 = vld [vmem:[%s1 + $0x48] sm:$0xff]
        %v246 = vld [vmem:[%s1 + $0x50] sm:$0xff]
        %v247 = vld [vmem:[%s1 + $0x58] sm:$0xff]
        %v248 = vld [vmem:[%s1 + $0x60] sm:$0xff]
        %v249 = vld [vmem:[%s1 + $0x68] sm:$0xff]
        %v250 = vld [vmem:[%s1 + $0x70] sm:$0xff]
        %v251 = vld [vmem:[%s1 + $0x78] sm:$0xff]
        %v252 = vld [vmem:[%s1 + $0x80] sm:$0xff]
        %v253 = vld [vmem:[%s1 + $0x88] sm:$0xff]
        %v254 = vld [vmem:[%s1 + $0x90] sm:$0xff]
        %v255 = vld [vmem:[%s1 + $0x98] sm:$0xff]
        %v256 = vld [vmem:[%s1 + $0xa0] sm:$0xff]
        %v257 = vld [vmem:[%s1 + $0xa8] sm:$0xff]
        %v258 = vld [vmem:[%s1 + $0xb0] sm:$0xff]
        %v259 = vld [vmem:[%s1 + $0xb8] sm:$0xff]
        %v260 = vld [vmem:[%s1 + $0xc0] sm:$0xff]
        %v261 = vld [vmem:[%s1 + $0xc8] sm:$0xff]
        %v262 = vld [vmem:[%s1 + $0xd0] sm:$0xff]
        %v263 = vld [vmem:[%s1 + $0xd8] sm:$0xff]
        %v264 = vld [vmem:[%s1 + $0xe0] sm:$0xff]
        %v265 = vld [vmem:[%s1 + $0xe8] sm:$0xff]
        %v266 = vld [vmem:[%s1 + $0xf0] sm:$0xff]
        %v267 = vld [vmem:[%s1 + $0xf8] sm:$0xff]
        %v268 = vld [vmem:[%s1 + $0x100] sm:$0xff]
        %v269 = vld [vmem:[%s1 + $0x108] sm:$0xff]
        %v270 = vld [vmem:[%s2] sm:$0xff]
        %v271 = vld [vmem:[%s2 + $0x8] sm:$0xff]
        %v272 = vld [vmem:[%s2 + $0x10] sm:$0xff]
        %v273 = vld [vmem:[%s2 + $0x18] sm:$0xff]
        %v274 = vld [vmem:[%s3] sm:$0xff]
        %v275 = vld [vmem:[%s3 + $0x8] sm:$0xff]
        %v276 = vld [vmem:[%s3 + $0x10] sm:$0xff]
        %v277 = vld [vmem:[%s3 + $0x18] sm:$0xff]
        %v278 = vld [vmem:[%s3 + $0x20] sm:$0xff]
        %v279 = vld [vmem:[%s3 + $0x28] sm:$0xff]
        %v280 = vld [vmem:[%s3 + $0x30] sm:$0xff]
        %v281 = vld [vmem:[%s3 + $0x38] sm:$0xff]
        %v282 = vld [vmem:[%s3 + $0x40] sm:$0xff]
        %v283 = vld [vmem:[%s3 + $0x48] sm:$0xff]
        %v284 = vld [vmem:[%s3 + $0x50] sm:$0xff]
        %v285 = vld [vmem:[%s3 + $0x58] sm:$0xff]
        %v286 = vld [vmem:[%s3 + $0x60] sm:$0xff]
        %v287 = vld [vmem:[%s3 + $0x68] sm:$0xff]
        %v288 = vld [vmem:[%s3 + $0x70] sm:$0xff]
        %v289 = vld [vmem:[%s3 + $0x78] sm:$0xff]
        %v290 = vld [vmem:[%s3 + $0x80] sm:$0xff]
        %v291 = vld [vmem:[%s3 + $0x88] sm:$0xff]
        %v292 = vld [vmem:[%s3 + $0x90] sm:$0xff]
        %v293 = vld [vmem:[%s3 + $0x98] sm:$0xff]
        %v294 = vld [vmem:[%s3 + $0xa0] sm:$0xff]
        %v295 = vld [vmem:[%s3 + $0xa8] sm:$0xff]
        %v296 = vld [vmem:[%s3 + $0xb0] sm:$0xff]
        %v297 = vld [vmem:[%s3 + $0xb8] sm:$0xff]
        %v298 = vld [vmem:[%s3 + $0xc0] sm:$0xff]
        %v299 = vld [vmem:[%s3 + $0xc8] sm:$0xff]
        %301 = vset.pattern.permute.xlu0 0
        %302 = vperm.xlu0 %301, %v274
        %v303 = vpop.permute.xlu0 %302
        %306 = vset.pattern.permute.xlu0 0
        %307 = vperm.xlu0 %306, %v275
        %v308 = vpop.permute.xlu0 %307
        %311 = vset.pattern.permute.xlu0 0
        %312 = vperm.xlu0 %311, %v276
        %v313 = vpop.permute.xlu0 %312
        %316 = vset.pattern.permute.xlu0 0
        %317 = vperm.xlu0 %316, %v277
        %v318 = vpop.permute.xlu0 %317
        %321 = vset.pattern.permute.xlu0 0
        %322 = vperm.xlu0 %321, %v278
        %v323 = vpop.permute.xlu0 %322
        %326 = vset.pattern.permute.xlu0 0
        %327 = vperm.xlu0 %326, %v279
        %v328 = vpop.permute.xlu0 %327
        %331 = vset.pattern.permute.xlu0 0
        %332 = vperm.xlu0 %331, %v280
        %v333 = vpop.permute.xlu0 %332
        %336 = vset.pattern.permute.xlu0 0
        %337 = vperm.xlu0 %336, %v281
        %v338 = vpop.permute.xlu0 %337
        %341 = vset.pattern.permute.xlu0 0
        %342 = vperm.xlu0 %341, %v282
        %v343 = vpop.permute.xlu0 %342
        %346 = vset.pattern.permute.xlu0 0
        %347 = vperm.xlu0 %346, %v283
        %v348 = vpop.permute.xlu0 %347
        %351 = vset.pattern.permute.xlu0 0
        %352 = vperm.xlu0 %351, %v284
        %v353 = vpop.permute.xlu0 %352
        %356 = vset.pattern.permute.xlu0 0
        %357 = vperm.xlu0 %356, %v285
        %v358 = vpop.permute.xlu0 %357
        %361 = vset.pattern.permute.xlu0 0
        %362 = vperm.xlu0 %361, %v286
        %v363 = vpop.permute.xlu0 %362
        %366 = vset.pattern.permute.xlu0 0
        %367 = vperm.xlu0 %366, %v287
        %v368 = vpop.permute.xlu0 %367
        %371 = vset.pattern.permute.xlu0 0
        %372 = vperm.xlu0 %371, %v288
        %v373 = vpop.permute.xlu0 %372
        %376 = vset.pattern.permute.xlu0 0
        %377 = vperm.xlu0 %376, %v289
        %v378 = vpop.permute.xlu0 %377
        %381 = vset.pattern.permute.xlu0 0
        %382 = vperm.xlu0 %381, %v290
        %v383 = vpop.permute.xlu0 %382
        %386 = vset.pattern.permute.xlu0 0
        %387 = vperm.xlu0 %386, %v291
        %v388 = vpop.permute.xlu0 %387
        %391 = vset.pattern.permute.xlu0 0
        %392 = vperm.xlu0 %391, %v292
        %v393 = vpop.permute.xlu0 %392
        %396 = vset.pattern.permute.xlu0 0
        %397 = vperm.xlu0 %396, %v293
        %v398 = vpop.permute.xlu0 %397
        %401 = vset.pattern.permute.xlu0 0
        %402 = vperm.xlu0 %401, %v294
        %v403 = vpop.permute.xlu0 %402
        %406 = vset.pattern.permute.xlu0 0
        %407 = vperm.xlu0 %406, %v295
        %v408 = vpop.permute.xlu0 %407
        %411 = vset.pattern.permute.xlu0 0
        %412 = vperm.xlu0 %411, %v296
        %v413 = vpop.permute.xlu0 %412
        %416 = vset.pattern.permute.xlu0 0
        %417 = vperm.xlu0 %416, %v297
        %v418 = vpop.permute.xlu0 %417
        %vm420 = vcmask 130048
        %v422 = vsel %vm420, %v236, 0
        %v425 = vsel %vm420, %v237, 0
        %v428 = vsel %vm420, %v238, 0
        %v431 = vsel %vm420, %v239, 0
        %v434 = vsel %vm420, %v240, 0
        %v437 = vsel %vm420, %v241, 0
        %v440 = vsel %vm420, %v242, 0
        %v443 = vsel %vm420, %v243, 0
        %v446 = vsel %vm420, %v244, 0
        %v449 = vsel %vm420, %v245, 0
        %v452 = vsel %vm420, %v246, 0
        %v455 = vsel %vm420, %v247, 0
        %v458 = vsel %vm420, %v248, 0
        %v461 = vsel %vm420, %v249, 0
        %v464 = vsel %vm420, %v250, 0
        %v467 = vsel %vm420, %v251, 0
        %v470 = vsel %vm420, %v252, 0
        %v473 = vsel %vm420, %v253, 0
        %v476 = vsel %vm420, %v254, 0
        %v479 = vsel %vm420, %v255, 0
        %v482 = vsel %vm420, %v256, 0
        %v485 = vsel %vm420, %v257, 0
        %v488 = vsel %vm420, %v258, 0
        %v491 = vsel %vm420, %v259, 0
        %493 = vmatprep.subr.mxu0 0.0
        %494 = vmatpush1.msra.mxu0 %v234
        %495 = vmatprep.subr.mxu0 0.0
        %496 = vmatpush1.msra.mxu0 %v235
        %497 = vmatprep.subr.mxu0 0.0
        %498 = vmatpush1.msra.mxu0 0.0
        %499 = vmatprep.subr.mxu0 0.0
        %500 = vmatpush1.msra.mxu0 0.0
        %501 = vmatprep.subr.mxu0 0.0
        %502 = vmatpush1.msra.mxu0 0.0
        %503 = vmatprep.subr.mxu0 0.0
        %504 = vmatpush1.msra.mxu0 0.0
        %505 = vmatprep.subr.mxu0 0.0
        %506 = vmatpush1.msra.mxu0 0.0
        %507 = vmatprep.subr.mxu0 0.0
        %508 = vmatpush1.msra.mxu0 0.0
        %509 = vmatprep.subr.mxu0 0.0
        %510 = vmatpush1.msra.mxu0 0.0
        %511 = vmatprep.subr.mxu0 0.0
        %512 = vmatpush1.msra.mxu0 0.0
        %513 = vmatprep.subr.mxu0 0.0
        %514 = vmatpush1.msra.mxu0 0.0
        %515 = vmatprep.subr.mxu0 0.0
        %516 = vmatpush1.msra.mxu0 0.0
        %517 = vmatprep.subr.mxu0 0.0
        %518 = vmatpush1.msra.mxu0 0.0
        %519 = vmatprep.subr.mxu0 0.0
        %520 = vmatpush1.msra.mxu0 0.0
        %521 = vmatprep.subr.mxu0 0.0
        %522 = vmatpush1.msra.mxu0 0.0
        %523 = vmatprep.subr.mxu0 0.0
        %524 = vmatpush1.msra.mxu0 0.0
        %525 = vmatprep.subr.mxu0 0.0
        %526 = vmatpush1.msra.mxu0 0.0
        %527 = vmatprep.subr.mxu0 0.0
        %528 = vmatpush1.msra.mxu0 0.0
        %529 = vmatprep.subr.mxu0 0.0
        %530 = vmatpush1.msra.mxu0 0.0
        %531 = vmatprep.subr.mxu0 0.0
        %532 = vmatpush1.msra.mxu0 0.0
        %533 = vmatprep.subr.mxu0 0.0
        %534 = vmatpush1.msra.mxu0 0.0
        %535 = vmatprep.subr.mxu0 0.0
        %536 = vmatpush1.msra.mxu0 0.0
        %537 = vmatprep.subr.mxu0 0.0
        %538 = vmatpush1.msra.mxu0 0.0
        %539 = vmatprep.subr.mxu0 0.0
        %540 = vmatpush1.msra.mxu0 0.0
        %541 = vmatprep.subr.mxu0 0.0
        %542 = vmatpush1.msra.mxu0 0.0
        %543 = vmatprep.subr.mxu0 0.0
        %544 = vmatpush1.msra.mxu0 0.0
        %545 = vmatprep.subr.mxu0 0.0
        %546 = vmatpush1.msra.mxu0 0.0
        %547 = vmatprep.subr.mxu0 0.0
        %548 = vmatpush1.msra.mxu0 0.0
        %549 = vmatprep.subr.mxu0 0.0
        %550 = vmatpush1.msra.mxu0 0.0
        %551 = vmatprep.subr.mxu0 0.0
        %552 = vmatpush1.msra.mxu0 0.0
        %553 = vmatprep.subr.mxu0 0.0
        %554 = vmatpush1.msra.mxu0 0.0
        %555 = vmatprep.subr.mxu0 0.0
        %556 = vmatpush1.msra.mxu0 0.0
        %557 = vmatprep.mubr.f32.mxu0 0.0
        %558 = vmatmul.mubr.f32.gmra.mrb[0].mxu0 %v422
        %v559 = vpop.f32.mrb[0].mxu0
        %v560 = vadd.f32 %v303, %v559
        %v561 = vpop.f32.mrb[0].mxu0
        %562 = vmatprep.mubr.f32.mxu0 0.0
        %563 = vmatmul.mubr.f32.gmra.mrb[0].mxu0 %v425
        %v564 = vpop.f32.mrb[0].mxu0
        %v565 = vadd.f32 %v308, %v564
        %v566 = vpop.f32.mrb[0].mxu0
        %567 = vmatprep.mubr.f32.mxu0 0.0
        %568 = vmatmul.mubr.f32.gmra.mrb[0].mxu0 %v428
        %v569 = vpop.f32.mrb[0].mxu0
        %v570 = vadd.f32 %v313, %v569
        %v571 = vpop.f32.mrb[0].mxu0
        %572 = vmatprep.mubr.f32.mxu0 0.0
        %573 = vmatmul.mubr.f32.gmra.mrb[0].mxu0 %v431
        %v574 = vpop.f32.mrb[0].mxu0
        %v575 = vadd.f32 %v318, %v574
        %v576 = vpop.f32.mrb[0].mxu0
        %577 = vmatprep.mubr.f32.mxu0 0.0
        %578 = vmatmul.mubr.f32.gmra.mrb[0].mxu0 %v434
        %v579 = vpop.f32.mrb[0].mxu0
        %v580 = vadd.f32 %v323, %v579
        %v581 = vpop.f32.mrb[0].mxu0
        %582 = vmatprep.mubr.f32.mxu0 0.0
        %583 = vmatmul.mubr.f32.gmra.mrb[0].mxu0 %v437
        %v584 = vpop.f32.mrb[0].mxu0
        %v585 = vadd.f32 %v328, %v584
        %v586 = vpop.f32.mrb[0].mxu0
        %587 = vmatprep.mubr.f32.mxu0 0.0
        %588 = vmatmul.mubr.f32.gmra.mrb[0].mxu0 %v440
        %v589 = vpop.f32.mrb[0].mxu0
        %v590 = vadd.f32 %v333, %v589
        %v591 = vpop.f32.mrb[0].mxu0
        %592 = vmatprep.mubr.f32.mxu0 0.0
        %593 = vmatmul.mubr.f32.gmra.mrb[0].mxu0 %v443
        %v594 = vpop.f32.mrb[0].mxu0
        %v595 = vadd.f32 %v338, %v594
        %v596 = vpop.f32.mrb[0].mxu0
        %597 = vmatprep.mubr.f32.mxu0 0.0
        %598 = vmatmul.mubr.f32.gmra.mrb[0].mxu0 %v446
        %v599 = vpop.f32.mrb[0].mxu0
        %v600 = vadd.f32 %v343, %v599
        %v601 = vpop.f32.mrb[0].mxu0
        %602 = vmatprep.mubr.f32.mxu0 0.0
        %603 = vmatmul.mubr.f32.gmra.mrb[0].mxu0 %v449
        %v604 = vpop.f32.mrb[0].mxu0
        %v605 = vadd.f32 %v348, %v604
        %v606 = vpop.f32.mrb[0].mxu0
        %607 = vmatprep.mubr.f32.mxu0 0.0
        %608 = vmatmul.mubr.f32.gmra.mrb[0].mxu0 %v452
        %v609 = vpop.f32.mrb[0].mxu0
        %v610 = vadd.f32 %v353, %v609
        %v611 = vpop.f32.mrb[0].mxu0
        %612 = vmatprep.mubr.f32.mxu0 0.0
        %613 = vmatmul.mubr.f32.gmra.mrb[0].mxu0 %v455
        %v614 = vpop.f32.mrb[0].mxu0
        %v615 = vadd.f32 %v358, %v614
        %v616 = vpop.f32.mrb[0].mxu0
        %617 = vmatprep.mubr.f32.mxu0 0.0
        %618 = vmatmul.mubr.f32.gmra.mrb[0].mxu0 %v458
        %v619 = vpop.f32.mrb[0].mxu0
        %v620 = vadd.f32 %v363, %v619
        %v621 = vpop.f32.mrb[0].mxu0
        %622 = vmatprep.mubr.f32.mxu0 0.0
        %623 = vmatmul.mubr.f32.gmra.mrb[0].mxu0 %v461
        %v624 = vpop.f32.mrb[0].mxu0
        %v625 = vadd.f32 %v368, %v624
        %v626 = vpop.f32.mrb[0].mxu0
        %627 = vmatprep.mubr.f32.mxu0 0.0
        %628 = vmatmul.mubr.f32.gmra.mrb[0].mxu0 %v464
        %v629 = vpop.f32.mrb[0].mxu0
        %v630 = vadd.f32 %v373, %v629
        %v631 = vpop.f32.mrb[0].mxu0
        %632 = vmatprep.mubr.f32.mxu0 0.0
        %633 = vmatmul.mubr.f32.gmra.mrb[0].mxu0 %v467
        %v634 = vpop.f32.mrb[0].mxu0
        %v635 = vadd.f32 %v378, %v634
        %v636 = vpop.f32.mrb[0].mxu0
        %637 = vmatprep.mubr.f32.mxu0 0.0
        %638 = vmatmul.mubr.f32.gmra.mrb[0].mxu0 %v470
        %v639 = vpop.f32.mrb[0].mxu0
        %v640 = vadd.f32 %v383, %v639
        %v641 = vpop.f32.mrb[0].mxu0
        %642 = vmatprep.mubr.f32.mxu0 0.0
        %643 = vmatmul.mubr.f32.gmra.mrb[0].mxu0 %v473
        %v644 = vpop.f32.mrb[0].mxu0
        %v645 = vadd.f32 %v388, %v644
        %v646 = vpop.f32.mrb[0].mxu0
        %647 = vmatprep.mubr.f32.mxu0 0.0
        %648 = vmatmul.mubr.f32.gmra.mrb[0].mxu0 %v476
        %v649 = vpop.f32.mrb[0].mxu0
        %v650 = vadd.f32 %v393, %v649
        %v651 = vpop.f32.mrb[0].mxu0
        %652 = vmatprep.mubr.f32.mxu0 0.0
        %653 = vmatmul.mubr.f32.gmra.mrb[0].mxu0 %v479
        %v654 = vpop.f32.mrb[0].mxu0
        %v655 = vadd.f32 %v398, %v654
        %v656 = vpop.f32.mrb[0].mxu0
        %657 = vmatprep.mubr.f32.mxu0 0.0
        %658 = vmatmul.mubr.f32.gmra.mrb[0].mxu0 %v482
        %v659 = vpop.f32.mrb[0].mxu0
        %v660 = vadd.f32 %v403, %v659
        %v661 = vpop.f32.mrb[0].mxu0
        %662 = vmatprep.mubr.f32.mxu0 0.0
        %663 = vmatmul.mubr.f32.gmra.mrb[0].mxu0 %v485
        %v664 = vpop.f32.mrb[0].mxu0
        %v665 = vadd.f32 %v408, %v664
        %v666 = vpop.f32.mrb[0].mxu0
        %667 = vmatprep.mubr.f32.mxu0 0.0
        %668 = vmatmul.mubr.f32.gmra.mrb[0].mxu0 %v488
        %v669 = vpop.f32.mrb[0].mxu0
        %v670 = vadd.f32 %v413, %v669
        %v671 = vpop.f32.mrb[0].mxu0
        %672 = vmatprep.mubr.f32.mxu0 0.0
        %673 = vmatmul.mubr.f32.gmra.mrb[0].mxu0 %v491
        %v674 = vpop.f32.mrb[0].mxu0
        %v675 = vadd.f32 %v418, %v674
        %v676 = vpop.f32.mrb[0].mxu0
        %677 = vdwg.mxu0
        %v678 = vmul.f32 %v560, %v600
        %v679 = vmul.f32 %v565, %v605
        %v680 = vmul.f32 %v570, %v610
        %v681 = vmul.f32 %v575, %v615
        %v682 = vmul.f32 %v580, %v620
        %v683 = vmul.f32 %v585, %v625
        %v684 = vmul.f32 %v590, %v630
        %v685 = vmul.f32 %v595, %v635
        %vm686 = vcmask 523264
        %v688 = vsel %vm686, %v270, 0
        %v691 = vsel %vm686, %v271, 0
        %693 = vmatprep.subr.mxu0 0.0
        %694 = vmatpush1.msra.mxu0 %v678
        %695 = vmatprep.subr.mxu0 0.0
        %696 = vmatpush1.msra.mxu0 %v679
        %697 = vmatprep.subr.mxu0 0.0
        %698 = vmatpush1.msra.mxu0 %v680
        %699 = vmatprep.subr.mxu0 0.0
        %700 = vmatpush1.msra.mxu0 %v681
        %701 = vmatprep.subr.mxu0 0.0
        %702 = vmatpush1.msra.mxu0 %v682
        %703 = vmatprep.subr.mxu0 0.0
        %704 = vmatpush1.msra.mxu0 %v683
        %705 = vmatprep.subr.mxu0 0.0
        %706 = vmatpush1.msra.mxu0 %v684
        %707 = vmatprep.subr.mxu0 0.0
        %708 = vmatpush1.msra.mxu0 %v685
        %709 = vmatprep.subr.mxu0 0.0
        %710 = vmatpush1.msra.mxu0 0.0
        %711 = vmatprep.subr.mxu0 0.0
        %712 = vmatpush1.msra.mxu0 0.0
        %713 = vmatprep.subr.mxu0 0.0
        %714 = vmatpush1.msra.mxu0 0.0
        %715 = vmatprep.subr.mxu0 0.0
        %716 = vmatpush1.msra.mxu0 0.0
        %717 = vmatprep.subr.mxu0 0.0
        %718 = vmatpush1.msra.mxu0 0.0
        %719 = vmatprep.subr.mxu0 0.0
        %720 = vmatpush1.msra.mxu0 0.0
        %721 = vmatprep.subr.mxu0 0.0
        %722 = vmatpush1.msra.mxu0 0.0
        %723 = vmatprep.subr.mxu0 0.0
        %724 = vmatpush1.msra.mxu0 0.0
        %725 = vmatprep.subr.mxu0 0.0
        %726 = vmatpush1.msra.mxu0 0.0
        %727 = vmatprep.subr.mxu0 0.0
        %728 = vmatpush1.msra.mxu0 0.0
        %729 = vmatprep.subr.mxu0 0.0
        %730 = vmatpush1.msra.mxu0 0.0
        %731 = vmatprep.subr.mxu0 0.0
        %732 = vmatpush1.msra.mxu0 0.0
        %733 = vmatprep.subr.mxu0 0.0
        %734 = vmatpush1.msra.mxu0 0.0
        %735 = vmatprep.subr.mxu0 0.0
        %736 = vmatpush1.msra.mxu0 0.0
        %737 = vmatprep.subr.mxu0 0.0
        %738 = vmatpush1.msra.mxu0 0.0
        %739 = vmatprep.subr.mxu0 0.0
        %740 = vmatpush1.msra.mxu0 0.0
        %741 = vmatprep.subr.mxu0 0.0
        %742 = vmatpush1.msra.mxu0 0.0
        %743 = vmatprep.subr.mxu0 0.0
        %744 = vmatpush1.msra.mxu0 0.0
        %745 = vmatprep.subr.mxu0 0.0
        %746 = vmatpush1.msra.mxu0 0.0
        %747 = vmatprep.subr.mxu0 0.0
        %748 = vmatpush1.msra.mxu0 0.0
        %749 = vmatprep.subr.mxu0 0.0
        %750 = vmatpush1.msra.mxu0 0.0
        %751 = vmatprep.subr.mxu0 0.0
        %752 = vmatpush1.msra.mxu0 0.0
        %753 = vmatprep.subr.mxu0 0.0
        %754 = vmatpush1.msra.mxu0 0.0
        %755 = vmatprep.subr.mxu0 0.0
        %756 = vmatpush1.msra.mxu0 0.0
        %757 = vmatprep.mubr.f32.mxu0 0.0
        %758 = vmatmul.mubr.f32.gmra.mrb[0].mxu0 %v688
        %v759 = vpop.f32.mrb[0].mxu0
        %v760 = vadd.f32 0.0, %v759
        %v761 = vpop.f32.mrb[0].mxu0
        %762 = vmatprep.mubr.f32.mxu0 0.0
        %763 = vmatmul.mubr.f32.gmra.mrb[0].mxu0 %v691
        %v764 = vpop.f32.mrb[0].mxu0
        %v765 = vadd.f32 0.0, %v764
        %v766 = vpop.f32.mrb[0].mxu0
        %767 = vdwg.mxu0
        %v768 = vmax.f32 %v760, %v765
        %v769 = vrot.slane %v768, 4
        %v770 = vmax.f32 %v768, %v769
        %v771 = vrot.slane %v770, 2
        %v772 = vmax.f32 %v770, %v771
        %v773 = vrot.slane %v772, 1
        %v774 = vmax.f32 %v772, %v773
        %v775 = vsub.f32 %v760, %v774
        %v776 = vsub.f32 %v765, %v774
        %v777 = vmul.f32 %v775, 1.442695
        %v778 = vpow.pop %v777
        %v779 = vmul.f32 %v776, 1.442695
        %v780 = vpow.pop %v779
        %v782 = vsel %vm420, %v268, 0
        %v785 = vsel %vm420, %v269, 0
        %787 = vmatprep.subr.mxu0 0.0
        %788 = vmatpush1.msra.mxu0 %v778
        %789 = vmatprep.subr.mxu0 0.0
        %790 = vmatpush1.msra.mxu0 %v780
        %791 = vmatprep.subr.mxu0 0.0
        %792 = vmatpush1.msra.mxu0 0.0
        %793 = vmatprep.subr.mxu0 0.0
        %794 = vmatpush1.msra.mxu0 0.0
        %795 = vmatprep.subr.mxu0 0.0
        %796 = vmatpush1.msra.mxu0 0.0
        %797 = vmatprep.subr.mxu0 0.0
        %798 = vmatpush1.msra.mxu0 0.0
        %799 = vmatprep.subr.mxu0 0.0
        %800 = vmatpush1.msra.mxu0 0.0
        %801 = vmatprep.subr.mxu0 0.0
        %802 = vmatpush1.msra.mxu0 0.0
        %803 = vmatprep.subr.mxu0 0.0
        %804 = vmatpush1.msra.mxu0 0.0
        %805 = vmatprep.subr.mxu0 0.0
        %806 = vmatpush1.msra.mxu0 0.0
        %807 = vmatprep.subr.mxu0 0.0
        %808 = vmatpush1.msra.mxu0 0.0
        %809 = vmatprep.subr.mxu0 0.0
        %810 = vmatpush1.msra.mxu0 0.0
        %811 = vmatprep.subr.mxu0 0.0
        %812 = vmatpush1.msra.mxu0 0.0
        %813 = vmatprep.subr.mxu0 0.0
        %814 = vmatpush1.msra.mxu0 0.0
        %815 = vmatprep.subr.mxu0 0.0
        %816 = vmatpush1.msra.mxu0 0.0
        %817 = vmatprep.subr.mxu0 0.0
        %818 = vmatpush1.msra.mxu0 0.0
        %819 = vmatprep.subr.mxu0 0.0
        %820 = vmatpush1.msra.mxu0 0.0
        %821 = vmatprep.subr.mxu0 0.0
        %822 = vmatpush1.msra.mxu0 0.0
        %823 = vmatprep.subr.mxu0 0.0
        %824 = vmatpush1.msra.mxu0 0.0
        %825 = vmatprep.subr.mxu0 0.0
        %826 = vmatpush1.msra.mxu0 0.0
        %827 = vmatprep.subr.mxu0 0.0
        %828 = vmatpush1.msra.mxu0 0.0
        %829 = vmatprep.subr.mxu0 0.0
        %830 = vmatpush1.msra.mxu0 0.0
        %831 = vmatprep.subr.mxu0 0.0
        %832 = vmatpush1.msra.mxu0 0.0
        %833 = vmatprep.subr.mxu0 0.0
        %834 = vmatpush1.msra.mxu0 0.0
        %835 = vmatprep.subr.mxu0 0.0
        %836 = vmatpush1.msra.mxu0 0.0
        %837 = vmatprep.subr.mxu0 0.0
        %838 = vmatpush1.msra.mxu0 0.0
        %839 = vmatprep.subr.mxu0 0.0
        %840 = vmatpush1.msra.mxu0 0.0
        %841 = vmatprep.subr.mxu0 0.0
        %842 = vmatpush1.msra.mxu0 0.0
        %843 = vmatprep.subr.mxu0 0.0
        %844 = vmatpush1.msra.mxu0 0.0
        %845 = vmatprep.subr.mxu0 0.0
        %846 = vmatpush1.msra.mxu0 0.0
        %847 = vmatprep.subr.mxu0 0.0
        %848 = vmatpush1.msra.mxu0 0.0
        %849 = vmatprep.subr.mxu0 0.0
        %850 = vmatpush1.msra.mxu0 0.0
        %851 = vmatprep.mubr.f32.mxu0 0.0
        %852 = vmatmul.mubr.f32.gmra.mrb[0].mxu0 %v782
        %v853 = vpop.f32.mrb[0].mxu0
        %v854 = vadd.f32 0.0, %v853
        %v855 = vpop.f32.mrb[0].mxu0
        %856 = vmatprep.mubr.f32.mxu0 0.0
        %857 = vmatmul.mubr.f32.gmra.mrb[0].mxu0 %v785
        %v858 = vpop.f32.mrb[0].mxu0
        %v859 = vadd.f32 0.0, %v858
        %v860 = vpop.f32.mrb[0].mxu0
        %861 = vdwg.mxu0
        %v862 = vrcp.pop %v854
        %v863 = vmul.f32 %v778, %v862
        %v864 = vrcp.pop %v859
        %v865 = vmul.f32 %v780, %v864
        %v867 = vsel %vm420, %v260, 0
        %v870 = vsel %vm420, %v261, 0
        %v873 = vsel %vm420, %v262, 0
        %v876 = vsel %vm420, %v263, 0
        %v879 = vsel %vm420, %v264, 0
        %v882 = vsel %vm420, %v265, 0
        %v885 = vsel %vm420, %v266, 0
        %v888 = vsel %vm420, %v267, 0
        %890 = vmatprep.subr.mxu0 0.0
        %891 = vmatpush1.msra.mxu0 %v863
        %892 = vmatprep.subr.mxu0 0.0
        %893 = vmatpush1.msra.mxu0 %v865
        %894 = vmatprep.subr.mxu0 0.0
        %895 = vmatpush1.msra.mxu0 0.0
        %896 = vmatprep.subr.mxu0 0.0
        %897 = vmatpush1.msra.mxu0 0.0
        %898 = vmatprep.subr.mxu0 0.0
        %899 = vmatpush1.msra.mxu0 0.0
        %900 = vmatprep.subr.mxu0 0.0
        %901 = vmatpush1.msra.mxu0 0.0
        %902 = vmatprep.subr.mxu0 0.0
        %903 = vmatpush1.msra.mxu0 0.0
        %904 = vmatprep.subr.mxu0 0.0
        %905 = vmatpush1.msra.mxu0 0.0
        %906 = vmatprep.subr.mxu0 0.0
        %907 = vmatpush1.msra.mxu0 0.0
        %908 = vmatprep.subr.mxu0 0.0
        %909 = vmatpush1.msra.mxu0 0.0
        %910 = vmatprep.subr.mxu0 0.0
        %911 = vmatpush1.msra.mxu0 0.0
        %912 = vmatprep.subr.mxu0 0.0
        %913 = vmatpush1.msra.mxu0 0.0
        %914 = vmatprep.subr.mxu0 0.0
        %915 = vmatpush1.msra.mxu0 0.0
        %916 = vmatprep.subr.mxu0 0.0
        %917 = vmatpush1.msra.mxu0 0.0
        %918 = vmatprep.subr.mxu0 0.0
        %919 = vmatpush1.msra.mxu0 0.0
        %920 = vmatprep.subr.mxu0 0.0
        %921 = vmatpush1.msra.mxu0 0.0
        %922 = vmatprep.subr.mxu0 0.0
        %923 = vmatpush1.msra.mxu0 0.0
        %924 = vmatprep.subr.mxu0 0.0
        %925 = vmatpush1.msra.mxu0 0.0
        %926 = vmatprep.subr.mxu0 0.0
        %927 = vmatpush1.msra.mxu0 0.0
        %928 = vmatprep.subr.mxu0 0.0
        %929 = vmatpush1.msra.mxu0 0.0
        %930 = vmatprep.subr.mxu0 0.0
        %931 = vmatpush1.msra.mxu0 0.0
        %932 = vmatprep.subr.mxu0 0.0
        %933 = vmatpush1.msra.mxu0 0.0
        %934 = vmatprep.subr.mxu0 0.0
        %935 = vmatpush1.msra.mxu0 0.0
        %936 = vmatprep.subr.mxu0 0.0
        %937 = vmatpush1.msra.mxu0 0.0
        %938 = vmatprep.subr.mxu0 0.0
        %939 = vmatpush1.msra.mxu0 0.0
        %940 = vmatprep.subr.mxu0 0.0
        %941 = vmatpush1.msra.mxu0 0.0
        %942 = vmatprep.subr.mxu0 0.0
        %943 = vmatpush1.msra.mxu0 0.0
        %944 = vmatprep.subr.mxu0 0.0
        %945 = vmatpush1.msra.mxu0 0.0
        %946 = vmatprep.subr.mxu0 0.0
        %947 = vmatpush1.msra.mxu0 0.0
        %948 = vmatprep.subr.mxu0 0.0
        %949 = vmatpush1.msra.mxu0 0.0
        %950 = vmatprep.subr.mxu0 0.0
        %951 = vmatpush1.msra.mxu0 0.0
        %952 = vmatprep.subr.mxu0 0.0
        %953 = vmatpush1.msra.mxu0 0.0
        %954 = vmatprep.mubr.f32.mxu0 0.0
        %955 = vmatmul.mubr.f32.gmra.mrb[0].mxu0 %v867
        %v956 = vpop.f32.mrb[0].mxu0
        %v957 = vadd.f32 0.0, %v956
        %v958 = vpop.f32.mrb[0].mxu0
        %959 = vmatprep.mubr.f32.mxu0 0.0
        %960 = vmatmul.mubr.f32.gmra.mrb[0].mxu0 %v870
        %v961 = vpop.f32.mrb[0].mxu0
        %v962 = vadd.f32 0.0, %v961
        %v963 = vpop.f32.mrb[0].mxu0
        %964 = vmatprep.mubr.f32.mxu0 0.0
        %965 = vmatmul.mubr.f32.gmra.mrb[0].mxu0 %v873
        %v966 = vpop.f32.mrb[0].mxu0
        %v967 = vadd.f32 0.0, %v966
        %v968 = vpop.f32.mrb[0].mxu0
        %969 = vmatprep.mubr.f32.mxu0 0.0
        %970 = vmatmul.mubr.f32.gmra.mrb[0].mxu0 %v876
        %v971 = vpop.f32.mrb[0].mxu0
        %v972 = vadd.f32 0.0, %v971
        %v973 = vpop.f32.mrb[0].mxu0
        %974 = vmatprep.mubr.f32.mxu0 0.0
        %975 = vmatmul.mubr.f32.gmra.mrb[0].mxu0 %v879
        %v976 = vpop.f32.mrb[0].mxu0
        %v977 = vadd.f32 0.0, %v976
        %v978 = vpop.f32.mrb[0].mxu0
        %979 = vmatprep.mubr.f32.mxu0 0.0
        %980 = vmatmul.mubr.f32.gmra.mrb[0].mxu0 %v882
        %v981 = vpop.f32.mrb[0].mxu0
        %v982 = vadd.f32 0.0, %v981
        %v983 = vpop.f32.mrb[0].mxu0
        %984 = vmatprep.mubr.f32.mxu0 0.0
        %985 = vmatmul.mubr.f32.gmra.mrb[0].mxu0 %v885
        %v986 = vpop.f32.mrb[0].mxu0
        %v987 = vadd.f32 0.0, %v986
        %v988 = vpop.f32.mrb[0].mxu0
        %989 = vmatprep.mubr.f32.mxu0 0.0
        %990 = vmatmul.mubr.f32.gmra.mrb[0].mxu0 %v888
        %v991 = vpop.f32.mrb[0].mxu0
        %v992 = vadd.f32 0.0, %v991
        %v993 = vpop.f32.mrb[0].mxu0
        %994 = vdwg.mxu0
        %v995 = vmul.f32 %v957, %v640
        %v996 = vmul.f32 %v962, %v645
        %v997 = vmul.f32 %v967, %v650
        %v998 = vmul.f32 %v972, %v655
        %v999 = vmul.f32 %v977, %v660
        %v1000 = vmul.f32 %v982, %v665
        %v1001 = vmul.f32 %v987, %v670
        %v1002 = vmul.f32 %v992, %v675
        %1004 = vset.pattern.permute.xlu0 0
        %1005 = vperm.xlu0 %1004, %v298
        %v1006 = vpop.permute.xlu0 %1005
        %1009 = vset.pattern.permute.xlu0 0
        %1010 = vperm.xlu0 %1009, %v299
        %v1011 = vpop.permute.xlu0 %1010
        %v1014 = vsel %vm686, %v272, 0
        %v1017 = vsel %vm686, %v273, 0
        %1019 = vmatprep.subr.mxu0 0.0
        %1020 = vmatpush1.msra.mxu0 %v995
        %1021 = vmatprep.subr.mxu0 0.0
        %1022 = vmatpush1.msra.mxu0 %v996
        %1023 = vmatprep.subr.mxu0 0.0
        %1024 = vmatpush1.msra.mxu0 %v997
        %1025 = vmatprep.subr.mxu0 0.0
        %1026 = vmatpush1.msra.mxu0 %v998
        %1027 = vmatprep.subr.mxu0 0.0
        %1028 = vmatpush1.msra.mxu0 %v999
        %1029 = vmatprep.subr.mxu0 0.0
        %1030 = vmatpush1.msra.mxu0 %v1000
        %1031 = vmatprep.subr.mxu0 0.0
        %1032 = vmatpush1.msra.mxu0 %v1001
        %1033 = vmatprep.subr.mxu0 0.0
        %1034 = vmatpush1.msra.mxu0 %v1002
        %1035 = vmatprep.subr.mxu0 0.0
        %1036 = vmatpush1.msra.mxu0 0.0
        %1037 = vmatprep.subr.mxu0 0.0
        %1038 = vmatpush1.msra.mxu0 0.0
        %1039 = vmatprep.subr.mxu0 0.0
        %1040 = vmatpush1.msra.mxu0 0.0
        %1041 = vmatprep.subr.mxu0 0.0
        %1042 = vmatpush1.msra.mxu0 0.0
        %1043 = vmatprep.subr.mxu0 0.0
        %1044 = vmatpush1.msra.mxu0 0.0
        %1045 = vmatprep.subr.mxu0 0.0
        %1046 = vmatpush1.msra.mxu0 0.0
        %1047 = vmatprep.subr.mxu0 0.0
        %1048 = vmatpush1.msra.mxu0 0.0
        %1049 = vmatprep.subr.mxu0 0.0
        %1050 = vmatpush1.msra.mxu0 0.0
        %1051 = vmatprep.subr.mxu0 0.0
        %1052 = vmatpush1.msra.mxu0 0.0
        %1053 = vmatprep.subr.mxu0 0.0
        %1054 = vmatpush1.msra.mxu0 0.0
        %1055 = vmatprep.subr.mxu0 0.0
        %1056 = vmatpush1.msra.mxu0 0.0
        %1057 = vmatprep.subr.mxu0 0.0
        %1058 = vmatpush1.msra.mxu0 0.0
        %1059 = vmatprep.subr.mxu0 0.0
        %1060 = vmatpush1.msra.mxu0 0.0
        %1061 = vmatprep.subr.mxu0 0.0
        %1062 = vmatpush1.msra.mxu0 0.0
        %1063 = vmatprep.subr.mxu0 0.0
        %1064 = vmatpush1.msra.mxu0 0.0
        %1065 = vmatprep.subr.mxu0 0.0
        %1066 = vmatpush1.msra.mxu0 0.0
        %1067 = vmatprep.subr.mxu0 0.0
        %1068 = vmatpush1.msra.mxu0 0.0
        %1069 = vmatprep.subr.mxu0 0.0
        %1070 = vmatpush1.msra.mxu0 0.0
        %1071 = vmatprep.subr.mxu0 0.0
        %1072 = vmatpush1.msra.mxu0 0.0
        %1073 = vmatprep.subr.mxu0 0.0
        %1074 = vmatpush1.msra.mxu0 0.0
        %1075 = vmatprep.subr.mxu0 0.0
        %1076 = vmatpush1.msra.mxu0 0.0
        %1077 = vmatprep.subr.mxu0 0.0
        %1078 = vmatpush1.msra.mxu0 0.0
        %1079 = vmatprep.subr.mxu0 0.0
        %1080 = vmatpush1.msra.mxu0 0.0
        %1081 = vmatprep.subr.mxu0 0.0
        %1082 = vmatpush1.msra.mxu0 0.0
        %1083 = vmatprep.mubr.f32.mxu0 0.0
        %1084 = vmatmul.mubr.f32.gmra.mrb[0].mxu0 %v1014
        %v1085 = vpop.f32.mrb[0].mxu0
        %v1086 = vadd.f32 %v1006, %v1085
        %v1087 = vpop.f32.mrb[0].mxu0
        %1088 = vmatprep.mubr.f32.mxu0 0.0
        %1089 = vmatmul.mubr.f32.gmra.mrb[0].mxu0 %v1017
        %v1090 = vpop.f32.mrb[0].mxu0
        %v1091 = vadd.f32 %v1011, %v1090
        %v1092 = vpop.f32.mrb[0].mxu0
        %1093 = vdwg.mxu0
        %1094 = vst [vmem:[%s233] sm:$0xff] %v1086
        %1095 = vst [vmem:[%s233 + $0x8] sm:$0xff] %v1091
        %s1096 = sand.u32 %s115, 1
        %s1097 = scalar_lea.sflag [#allocation4], %s1096
        %s1098 = sand.u32 %s115, 1
        %s1099 = smul.addr %s1098, 16
        %s1100 = scalar_lea.vmem [#allocation3], %s1099
        // Predicated region
        $region75: #{tpu_custom_call.1} parent=69 // pred_check
          %p1101 = pneg %p125
        $region76: #{tpu_custom_call.1} parent=69 // pred_check_branch
          %1103 = sbr.rel (%p1101) target = $region78
        $region77: #{tpu_custom_call.1} parent=69 // pred_region
          %s1105 = ssub.s32 256, 256
          %1106 = vsyncadd %s1097, %s1105
          %s1107 = smul.addr %s18, 128
          %s1108 = scalar_lea.hbm %s4, %s1107
          %s1109 = sshll.u32 %s1100, 4
          %s1110 = int_to_ptr.vmem [resolvable:$true] %s1109
          %1115 = dma.vmem_to_hbm [thread:$0]  %s1110, 256, %s1108, %s1097, 128, 256, 8
        $region78: #{tpu_custom_call.1} parent=69 // pred_fallthru
          _
      $region70: #{tpu_custom_call.1} parent=5 // pred_fallthru
        _
      %p1116 = scmp.le.s32.totalorder 2, %s13
      // Predicated region
      $region79: #{tpu_custom_call.1} parent=5 // pred_check
        %p1117 = pneg %p1116
      $region80: #{tpu_custom_call.1} parent=5 // pred_check_branch
        %1119 = sbr.rel (%p1117) target = $region82
      $region81: #{tpu_custom_call.1} parent=5 // pred_region
        %s1120 = ssub.s32 %s13, 2
        // Predicated region
        $region83: #{tpu_custom_call.1} parent=81 // pred_check
          %p1121 = pneg %p131
        $region84: #{tpu_custom_call.1} parent=81 // pred_check_branch
          %1123 = sbr.rel (%p1121) target = $region86
        $region85: #{tpu_custom_call.1} parent=81 // pred_region
          %s1124 = sand.u32 %s116, 1
          %s1125 = scalar_lea.sflag [#allocation4], %s1124
          %s1126 = sand.u32 %s116, 1
          %s1127 = smul.addr %s1126, 16
          %s1128 = scalar_lea.vmem [#allocation3], %s1127
          %1129 = dma.done %s1125, 256
        $region86: #{tpu_custom_call.1} parent=81 // pred_fallthru
          _
      $region82: #{tpu_custom_call.1} parent=5 // pred_fallthru
        _
    $region6: #{tpu_custom_call.1} parent=1 // loop_footer
      %s17 = sadd.s32 1, %s13
    $region7: #{tpu_custom_call.1} parent=1 // loop_footer_branch
      %12 = sbr.rel target = $region3
    $region8: #{tpu_custom_call.1} parent=1 // loop_exit
      _
    %1130 = vsyncpa [#allocation4], 1
    %s1131 = scalar_lea.sflag [#allocation4], 1
    %1132 = vsyncpa %s1131, 1

</llo_original>
